<compile_context>
chip_gen: v7x
topology: tpu7x:2x2x1
jax: 0.10.0
libtpu: 0.0.40
codegen_flags: <defaults>
</compile_context>

<pallas_src>
import functools

import jax
import jax.numpy as jnp
from jax.experimental import pallas as pl
from jax.experimental.pallas import tpu as pltpu


# --------------------------------------------------------------------------
# Pallas kernel: fused weighted-BCE-with-logits sum + weighted smooth-L1 sum
# --------------------------------------------------------------------------
def _rpn_loss_kernel(score_ref, bbox_ref, score_out_ref, bbox_out_ref,
                     acc_score_ref, acc_bbox_ref, *, sigma_2):
    j = pl.program_id(1)

    # init the per-core accumulators on the first step of this core's sweep
    @pl.when(j == 0)
    def _():
        acc_score_ref[...] = jnp.zeros_like(acc_score_ref)
        acc_bbox_ref[...] = jnp.zeros_like(acc_bbox_ref)

    # ---- weighted binary_cross_entropy_with_logits (reduction='sum') -------
    # numerically-stable form: max(x,0) - x*z + log1p(exp(-|x|))
    x = score_ref[0]           # (B, tile_n) logits
    z = score_ref[1]           # (B, tile_n) targets
    w = score_ref[2]           # (B, tile_n) score weights
    bw = score_ref[3]          # (B, tile_n) bbox weights
    bce = jnp.maximum(x, 0.0) - x * z + jnp.log1p(jnp.exp(-jnp.abs(x)))
    acc_score_ref[...] += w * bce                          # elementwise (VALU)

    # ---- sigma-parameterized smooth L1 --------------------------------------
    diff = bbox_ref[0] - bbox_ref[1]                       # (B, 6, tile_n)
    ad = jnp.abs(diff)
    sign = (ad < (1.0 / sigma_2)).astype(jnp.float32)
    in_loss = (diff * diff * (sigma_2 / 2.0) * sign
               + (ad - 0.5 / sigma_2) * (1.0 - sign))
    acc_bbox_ref[...] += bw[:, None, :] * in_loss          # elementwise (VALU)

    # ---- one cross-lane reduce + lane-dense store per core, on its last step
    @pl.when(j == pl.num_programs(1) - 1)
    def _():
        score_out_ref[...] = jnp.broadcast_to(jnp.sum(acc_score_ref[...]),
                                              score_out_ref.shape)
        bbox_out_ref[...] = jnp.broadcast_to(jnp.sum(acc_bbox_ref[...]),
                                             bbox_out_ref.shape)


def rpn_losses_pallas(rpn_score, rpn_score_target, rpn_score_weight,
                      rpn_bbox, rpn_bbox_target, rpn_bbox_weights,
                      sigma, tile_n=8192, num_cores=2):
    B, N = rpn_score.shape
    box_feat = rpn_bbox.shape[2] * rpn_bbox.shape[3]       # 2 * 3 = 6

    # stack the four (B, N) streams into one DMA stream: (4, B, N)
    score_stack = jnp.stack(
        [rpn_score, rpn_score_target, rpn_score_weight, rpn_bbox_weights],
        axis=0).astype(jnp.float32)

    # anchors onto the lane axis: (B, N, 2, 3) -> (B, 6, N); stack pred/target
    bbox_stack = jnp.stack(
        [jnp.transpose(rpn_bbox.reshape(B, N, box_feat), (0, 2, 1)),
         jnp.transpose(rpn_bbox_target.reshape(B, N, box_feat), (0, 2, 1))],
        axis=0).astype(jnp.float32)                        # (2, B, 6, N)

    # choose tile / pad anchors so padded N == num_cores * n_blocks * tile_n
    per_core = -(-N // num_cores)
    per_core = ((per_core + 127) // 128) * 128
    tile_n = max(128, min(int(tile_n), per_core))
    tile_n = ((tile_n + 127) // 128) * 128
    chunk = num_cores * tile_n
    n_pad = -(-N // chunk) * chunk
    if n_pad != N:              # zero-padded weights => zero extra loss
        pad = n_pad - N
        score_stack = jnp.pad(score_stack, ((0, 0), (0, 0), (0, pad)))
        bbox_stack = jnp.pad(bbox_stack, ((0, 0), (0, 0), (0, 0), (0, pad)))
    n_blocks = n_pad // chunk

    kernel = functools.partial(_rpn_loss_kernel, sigma_2=float(sigma) ** 2)

    score_spec = pl.BlockSpec((4, B, tile_n),
                              lambda c, j: (0, 0, c * n_blocks + j))
    bbox_spec = pl.BlockSpec((2, B, box_feat, tile_n),
                             lambda c, j: (0, 0, 0, c * n_blocks + j))
    out_spec = pl.BlockSpec((1, 8, 128), lambda c, j: (c, 0, 0))

    score_part, bbox_part = pl.pallas_call(
        kernel,
        out_shape=(jax.ShapeDtypeStruct((num_cores, 8, 128), jnp.float32),
                   jax.ShapeDtypeStruct((num_cores, 8, 128), jnp.float32)),
        grid_spec=pltpu.PrefetchScalarGridSpec(
            num_scalar_prefetch=0,
            grid=(num_cores, n_blocks),
            in_specs=[score_spec, bbox_spec],
            out_specs=[out_spec, out_spec],
            scratch_shapes=[pltpu.VMEM((B, tile_n), jnp.float32),
                            pltpu.VMEM((B, box_feat, tile_n), jnp.float32)]),
        compiler_params=pltpu.CompilerParams(
            dimension_semantics=("parallel", "arbitrary")),
    )(score_stack, bbox_stack)

    # one partial per core -> final (tiny) reduce in the wrapper
    return jnp.sum(score_part[:, 0, 0]), jnp.sum(bbox_part[:, 0, 0])


# --------------------------------------------------------------------------
# Module-equivalent wrapper (glue in plain JAX)
# --------------------------------------------------------------------------
class RpnLossPallas:
    def __init__(self, bbox_target_selector, sigma):
        self.bbox_target_selector = bbox_target_selector
        self.sigma = sigma

    def __call__(self, gt_bbox, rpn_target_calculator, rpn_score, rpn_bbox):
        (rpn_target_overlaps,
         _rpn_target_association,
         rpn_bbox_target) = rpn_target_calculator(gt_bbox)
        (rpn_score_target,
         rpn_score_weight,
         rpn_bbox_weights) = self.bbox_target_selector(rpn_target_overlaps)
        return rpn_losses_pallas(rpn_score, rpn_score_target, rpn_score_weight,
                                 rpn_bbox, rpn_bbox_target, rpn_bbox_weights,
                                 self.sigma)


# --------------------------------------------------------------------------
# Deterministic stand-ins for the externally supplied callables
# TODO(synk): rpn_target_calculator / bbox_target_selector are injected
#             dependencies in the original module; implemented here as
#             deterministic synthetic JAX functions.
# --------------------------------------------------------------------------
def make_rpn_target_calculator(key, B, N):
    k1, k2 = jax.random.split(key)
    overlaps = jax.random.uniform(k1, (B, N), dtype=jnp.float32)
    bbox_target = jax.random.normal(k2, (B, N, 2, 3), dtype=jnp.float32)
    association = jnp.zeros((B, N), dtype=jnp.int32)

    def calc(gt_bbox):
        del gt_bbox
        return overlaps, association, bbox_target
    return calc


def bbox_target_selector(overlaps):
    pos = (overlaps > 0.7).astype(jnp.float32)
    neg = (overlaps < 0.3).astype(jnp.float32)
    score_target = pos
    score_weight = pos + neg          # ignore anchors in the "gray zone"
    bbox_weights = pos
    return score_target, score_weight, bbox_weights


# --------------------------------------------------------------------------
# Pure-JAX reference of the torch forward (for verification)
# --------------------------------------------------------------------------
def _ref_losses(score, tgt, w, bbox, bbox_tgt, bbox_w, sigma):
    bce = jnp.maximum(score, 0.0) - score * tgt + jnp.log1p(jnp.exp(-jnp.abs(score)))
    score_loss = jnp.sum(w * bce)
    s2 = sigma ** 2
    d = bbox - bbox_tgt
    ad = jnp.abs(d)
    sign = (ad < 1.0 / s2).astype(jnp.float32)
    il = d * d * (s2 / 2.0) * sign + (ad - 0.5 / s2) * (1.0 - sign)
    bbox_loss = jnp.sum(bbox_w[..., None, None] * il)
    return score_loss, bbox_loss


if __name__ == "__main__":
    key = jax.random.PRNGKey(0)
    k_score, k_bbox, k_gt, k_tgt = jax.random.split(key, 4)

    B, N = 2, 2000                     # anchor count deliberately not tile-aligned
    sigma = 3.0

    rpn_score = jax.random.normal(k_score, (B, N), dtype=jnp.float32)
    rpn_bbox = jax.random.normal(k_bbox, (B, N, 2, 3), dtype=jnp.float32)
    gt_bbox = jax.random.uniform(k_gt, (B, 5, 2, 3), dtype=jnp.float32)

    rpn_target_calculator = make_rpn_target_calculator(k_tgt, B, N)
    loss_mod = RpnLossPallas(bbox_target_selector, sigma)

    score_loss, bbox_loss = loss_mod(gt_bbox, rpn_target_calculator,
                                     rpn_score, rpn_bbox)
    score_loss = jax.block_until_ready(score_loss)
    bbox_loss = jax.block_until_ready(bbox_loss)

    # verify against pure-JAX reference of the PyTorch semantics
    overlaps, _, bbox_target = rpn_target_calculator(gt_bbox)
    st, sw, bw = bbox_target_selector(overlaps)
    ref_score, ref_bbox = _ref_losses(rpn_score, st, sw,
                                      rpn_bbox, bbox_target, bw, sigma)
    assert jnp.allclose(score_loss, ref_score, rtol=2e-4, atol=1e-2), (
        score_loss, ref_score)
    assert jnp.allclose(bbox_loss, ref_bbox, rtol=2e-4, atol=1e-2), (
        bbox_loss, ref_bbox)

    # also exercise the multi-block accumulation path (small tile -> >1 step/core)
    s2_loss, b2_loss = rpn_losses_pallas(rpn_score, st, sw,
                                         rpn_bbox, bbox_target, bw,
                                         sigma, tile_n=128)
    s2_loss = jax.block_until_ready(s2_loss)
    b2_loss = jax.block_until_ready(b2_loss)
    assert jnp.allclose(s2_loss, ref_score, rtol=2e-4, atol=1e-2), (
        s2_loss, ref_score)
    assert jnp.allclose(b2_loss, ref_bbox, rtol=2e-4, atol=1e-2), (
        b2_loss, ref_bbox)

    print("KERNEL_OK")
</pallas_src>

<mosaic_0001>
module attributes {stable_mosaic.version = 11 : i64} {
  func.func @_rpn_loss_kernel(%arg0: i32, %arg1: i32, %arg2: memref<4x2x1024xf32, #tpu.memory_space<vmem>>, %arg3: memref<2x2x6x1024xf32, #tpu.memory_space<vmem>>, %arg4: memref<1x8x128xf32, #tpu.memory_space<vmem>>, %arg5: memref<1x8x128xf32, #tpu.memory_space<vmem>>, %arg6: memref<2x1024xf32, #tpu.memory_space<vmem>>, %arg7: memref<2x6x1024xf32, #tpu.memory_space<vmem>>) attributes {dimension_semantics = [#tpu.dimension_semantics<parallel>, #tpu.dimension_semantics<arbitrary>], iteration_bounds = array<i64: 2, 1>, scalar_prefetch = 0 : i64, scratch_operands = 2 : i64, tpu.core_type = #tpu.core_type<tc>, window_params = [{transform_indices = @transform_0, window_bounds = array<i64: 4, 2, 1024>}, {transform_indices = @transform_1, window_bounds = array<i64: 2, 2, 6, 1024>}, {transform_indices = @transform_2, window_bounds = array<i64: 1, 8, 128>}, {transform_indices = @transform_3, window_bounds = array<i64: 1, 8, 128>}]} {
    %c0_i32 = arith.constant 0 : i32
    %0 = arith.cmpi eq, %arg1, %c0_i32 : i32
    %1 = arith.extui %0 : i1 to i32
    %c0_i32_0 = arith.constant 0 : i32
    %2 = arith.cmpi ne, %1, %c0_i32_0 : i32
    scf.if %2 {
      %cst_34 = arith.constant 0.000000e+00 : f32
      %54 = vector.broadcast %cst_34 : f32 to vector<2x1024xf32>
      %c0_35 = arith.constant 0 : index
      %c0_36 = arith.constant 0 : index
      %55 = vector.load %arg6[%c0_35, %c0_36] : memref<2x1024xf32, #tpu.memory_space<vmem>>, vector<2x1024xf32>
      tpu.vector_store %arg6[%c0_35, %c0_36], %54 {strides = array<i32>} : memref<2x1024xf32, #tpu.memory_space<vmem>>, vector<2x1024xf32>,
      %cst_37 = arith.constant 0.000000e+00 : f32
      %56 = vector.broadcast %cst_37 : f32 to vector<2x6x1024xf32>
      %c0_38 = arith.constant 0 : index
      %c0_39 = arith.constant 0 : index
      %c0_40 = arith.constant 0 : index
      %57 = vector.load %arg7[%c0_38, %c0_39, %c0_40] : memref<2x6x1024xf32, #tpu.memory_space<vmem>>, vector<2x6x1024xf32>
      tpu.vector_store %arg7[%c0_38, %c0_39, %c0_40], %56 {strides = array<i32>} : memref<2x6x1024xf32, #tpu.memory_space<vmem>>, vector<2x6x1024xf32>,
    } else {
    }
    %c0 = arith.constant 0 : index
    %c0_1 = arith.constant 0 : index
    %c0_2 = arith.constant 0 : index
    %3 = vector.load %arg2[%c0, %c0_1, %c0_2] : memref<4x2x1024xf32, #tpu.memory_space<vmem>>, vector<1x2x1024xf32>
    %4 = vector.shape_cast %3 : vector<1x2x1024xf32> to vector<2x1024xf32>
    %c1 = arith.constant 1 : index
    %c0_3 = arith.constant 0 : index
    %c0_4 = arith.constant 0 : index
    %5 = vector.load %arg2[%c1, %c0_3, %c0_4] : memref<4x2x1024xf32, #tpu.memory_space<vmem>>, vector<1x2x1024xf32>
    %6 = vector.shape_cast %5 : vector<1x2x1024xf32> to vector<2x1024xf32>
    %c2 = arith.constant 2 : index
    %c0_5 = arith.constant 0 : index
    %c0_6 = arith.constant 0 : index
    %7 = vector.load %arg2[%c2, %c0_5, %c0_6] : memref<4x2x1024xf32, #tpu.memory_space<vmem>>, vector<1x2x1024xf32>
    %8 = vector.shape_cast %7 : vector<1x2x1024xf32> to vector<2x1024xf32>
    %c3 = arith.constant 3 : index
    %c0_7 = arith.constant 0 : index
    %c0_8 = arith.constant 0 : index
    %9 = vector.load %arg2[%c3, %c0_7, %c0_8] : memref<4x2x1024xf32, #tpu.memory_space<vmem>>, vector<1x2x1024xf32>
    %10 = vector.shape_cast %9 : vector<1x2x1024xf32> to vector<2x1024xf32>
    %cst = arith.constant 0.000000e+00 : f32
    %11 = vector.broadcast %cst : f32 to vector<2x1024xf32>
    %12 = arith.maximumf %4, %11 : vector<2x1024xf32>
    %13 = arith.mulf %4, %6 : vector<2x1024xf32>
    %14 = arith.subf %12, %13 : vector<2x1024xf32>
    %15 = math.absf %4 : vector<2x1024xf32>
    %cst_9 = arith.constant 0.000000e+00 : f32
    %16 = vector.broadcast %cst_9 : f32 to vector<2x1024xf32>
    %17 = arith.subf %16, %15 : vector<2x1024xf32>
    %18 = math.exp %17 : vector<2x1024xf32>
    %19 = math.log1p %18 : vector<2x1024xf32>
    %20 = arith.addf %14, %19 : vector<2x1024xf32>
    %c0_10 = arith.constant 0 : index
    %c0_11 = arith.constant 0 : index
    %21 = vector.load %arg6[%c0_10, %c0_11] : memref<2x1024xf32, #tpu.memory_space<vmem>>, vector<2x1024xf32>
    %22 = arith.mulf %8, %20 : vector<2x1024xf32>
    %23 = arith.addf %21, %22 : vector<2x1024xf32>
    %c0_12 = arith.constant 0 : index
    %c0_13 = arith.constant 0 : index
    %24 = vector.load %arg6[%c0_12, %c0_13] : memref<2x1024xf32, #tpu.memory_space<vmem>>, vector<2x1024xf32>
    tpu.vector_store %arg6[%c0_12, %c0_13], %23 {strides = array<i32>} : memref<2x1024xf32, #tpu.memory_space<vmem>>, vector<2x1024xf32>,
    %c0_14 = arith.constant 0 : index
    %c0_15 = arith.constant 0 : index
    %c0_16 = arith.constant 0 : index
    %c0_17 = arith.constant 0 : index
    %25 = vector.load %arg3[%c0_14, %c0_15, %c0_16, %c0_17] : memref<2x2x6x1024xf32, #tpu.memory_space<vmem>>, vector<1x2x6x1024xf32>
    %26 = vector.shape_cast %25 : vector<1x2x6x1024xf32> to vector<2x6x1024xf32>
    %c1_18 = arith.constant 1 : index
    %c0_19 = arith.constant 0 : index
    %c0_20 = arith.constant 0 : index
    %c0_21 = arith.constant 0 : index
    %27 = vector.load %arg3[%c1_18, %c0_19, %c0_20, %c0_21] : memref<2x2x6x1024xf32, #tpu.memory_space<vmem>>, vector<1x2x6x1024xf32>
    %28 = vector.shape_cast %27 : vector<1x2x6x1024xf32> to vector<2x6x1024xf32>
    %29 = arith.subf %26, %28 : vector<2x6x1024xf32>
    %30 = math.absf %29 : vector<2x6x1024xf32>
    %cst_22 = arith.constant 0.111111112 : f32
    %31 = vector.broadcast %cst_22 : f32 to vector<2x6x1024xf32>
    %32 = arith.cmpf olt, %30, %31 : vector<2x6x1024xf32>
    %33 = arith.extui %32 : vector<2x6x1024xi1> to vector<2x6x1024xi32>
    %34 = arith.sitofp %33 : vector<2x6x1024xi32> to vector<2x6x1024xf32>
    %35 = arith.mulf %29, %29 : vector<2x6x1024xf32>
    %cst_23 = arith.constant 4.500000e+00 : f32
    %36 = vector.broadcast %cst_23 : f32 to vector<2x6x1024xf32>
    %37 = arith.mulf %35, %36 : vector<2x6x1024xf32>
    %38 = arith.mulf %37, %34 : vector<2x6x1024xf32>
    %cst_24 = arith.constant 0.055555556 : f32
    %39 = vector.broadcast %cst_24 : f32 to vector<2x6x1024xf32>
    %40 = arith.subf %30, %39 : vector<2x6x1024xf32>
    %cst_25 = arith.constant 1.000000e+00 : f32
    %41 = vector.broadcast %cst_25 : f32 to vector<2x6x1024xf32>
    %42 = arith.subf %41, %34 : vector<2x6x1024xf32>
    %43 = arith.mulf %40, %42 : vector<2x6x1024xf32>
    %44 = arith.addf %38, %43 : vector<2x6x1024xf32>
    %c0_26 = arith.constant 0 : index
    %c0_27 = arith.constant 0 : index
    %c0_28 = arith.constant 0 : index
    %45 = vector.load %arg7[%c0_26, %c0_27, %c0_28] : memref<2x6x1024xf32, #tpu.memory_space<vmem>>, vector<2x6x1024xf32>
    %46 = vector.shape_cast %10 : vector<2x1024xf32> to vector<2x1x1024xf32>
    %47 = vector.broadcast %46 : vector<2x1x1024xf32> to vector<2x6x1024xf32>
    %48 = arith.mulf %47, %44 : vector<2x6x1024xf32>
    %49 = arith.addf %45, %48 : vector<2x6x1024xf32>
    %c0_29 = arith.constant 0 : index
    %c0_30 = arith.constant 0 : index
    %c0_31 = arith.constant 0 : index
    %50 = vector.load %arg7[%c0_29, %c0_30, %c0_31] : memref<2x6x1024xf32, #tpu.memory_space<vmem>>, vector<2x6x1024xf32>
    tpu.vector_store %arg7[%c0_29, %c0_30, %c0_31], %49 {strides = array<i32>} : memref<2x6x1024xf32, #tpu.memory_space<vmem>>, vector<2x6x1024xf32>,
    %c0_i32_32 = arith.constant 0 : i32
    %51 = arith.cmpi eq, %arg1, %c0_i32_32 : i32
    %52 = arith.extui %51 : i1 to i32
    %c0_i32_33 = arith.constant 0 : i32
    %53 = arith.cmpi ne, %52, %c0_i32_33 : i32
    scf.if %53 {
      %c0_34 = arith.constant 0 : index
      %c0_35 = arith.constant 0 : index
      %54 = vector.load %arg6[%c0_34, %c0_35] : memref<2x1024xf32, #tpu.memory_space<vmem>>, vector<2x1024xf32>
      %55 = vector.shape_cast %54 : vector<2x1024xf32> to vector<1x2x1024xf32>
      %cst_36 = arith.constant dense<0.000000e+00> : vector<1xf32>
      %56 = vector.multi_reduction <add>, %55, %cst_36 [1, 2] : vector<1x2x1024xf32> to vector<1xf32>
      %57 = vector.shape_cast %56 : vector<1xf32> to vector<1x1x1xf32>
      %58 = vector.extract %57[0, 0, 0] : f32 from vector<1x1x1xf32>
      %59 = vector.broadcast %58 : f32 to vector<1x8x128xf32>
      %c0_37 = arith.constant 0 : index
      %c0_38 = arith.constant 0 : index
      %c0_39 = arith.constant 0 : index
      %60 = vector.load %arg4[%c0_37, %c0_38, %c0_39] : memref<1x8x128xf32, #tpu.memory_space<vmem>>, vector<1x8x128xf32>
      tpu.vector_store %arg4[%c0_37, %c0_38, %c0_39], %59 {strides = array<i32>} : memref<1x8x128xf32, #tpu.memory_space<vmem>>, vector<1x8x128xf32>,
      %c0_40 = arith.constant 0 : index
      %c0_41 = arith.constant 0 : index
      %c0_42 = arith.constant 0 : index
      %61 = vector.load %arg7[%c0_40, %c0_41, %c0_42] : memref<2x6x1024xf32, #tpu.memory_space<vmem>>, vector<2x6x1024xf32>
      %62 = vector.shape_cast %61 : vector<2x6x1024xf32> to vector<1x2x6x1024xf32>
      %cst_43 = arith.constant dense<0.000000e+00> : vector<1xf32>
      %63 = vector.multi_reduction <add>, %62, %cst_43 [1, 2, 3] : vector<1x2x6x1024xf32> to vector<1xf32>
      %64 = vector.shape_cast %63 : vector<1xf32> to vector<1x1x1x1xf32>
      %65 = vector.extract %64[0, 0, 0, 0] : f32 from vector<1x1x1x1xf32>
      %66 = vector.broadcast %65 : f32 to vector<1x8x128xf32>
      %c0_44 = arith.constant 0 : index
      %c0_45 = arith.constant 0 : index
      %c0_46 = arith.constant 0 : index
      %67 = vector.load %arg5[%c0_44, %c0_45, %c0_46] : memref<1x8x128xf32, #tpu.memory_space<vmem>>, vector<1x8x128xf32>
      tpu.vector_store %arg5[%c0_44, %c0_45, %c0_46], %66 {strides = array<i32>} : memref<1x8x128xf32, #tpu.memory_space<vmem>>, vector<1x8x128xf32>,
    } else {
    }
    return
  }
  func.func @transform_0(%arg0: i32, %arg1: i32) -> (i32, i32, i32) {
    %c1_i32 = arith.constant 1 : i32
    %0 = arith.muli %arg0, %c1_i32 : i32
    %1 = arith.addi %0, %arg1 : i32
    %c0_i32 = arith.constant 0 : i32
    %c0_i32_0 = arith.constant 0 : i32
    %c0_i32_1 = arith.constant 0 : i32
    return %c0_i32, %c0_i32_0, %1 : i32, i32, i32
  }
  func.func @transform_1(%arg0: i32, %arg1: i32) -> (i32, i32, i32, i32) {
    %c1_i32 = arith.constant 1 : i32
    %0 = arith.muli %arg0, %c1_i32 : i32
    %1 = arith.addi %0, %arg1 : i32
    %c0_i32 = arith.constant 0 : i32
    %c0_i32_0 = arith.constant 0 : i32
    %c0_i32_1 = arith.constant 0 : i32
    %c0_i32_2 = arith.constant 0 : i32
    return %c0_i32, %c0_i32_0, %c0_i32_1, %1 : i32, i32, i32, i32
  }
  func.func @transform_2(%arg0: i32, %arg1: i32) -> (i32, i32, i32) {
    %c0_i32 = arith.constant 0 : i32
    %c0_i32_0 = arith.constant 0 : i32
    %c0_i32_1 = arith.constant 0 : i32
    return %arg0, %c0_i32, %c0_i32_0 : i32, i32, i32
  }
  func.func @transform_3(%arg0: i32, %arg1: i32) -> (i32, i32, i32) {
    %c0_i32 = arith.constant 0 : i32
    %c0_i32_0 = arith.constant 0 : i32
    %c0_i32_1 = arith.constant 0 : i32
    return %arg0, %c0_i32, %c0_i32_0 : i32, i32, i32
  }
}

</mosaic_0001>

<llo_original>
// kernel: tpu_custom_call.1
$region0: #{tpu_custom_call.1}
  #allocation0 [shape = 'u32[]', space=smem, size = 0x4, offset = 0x4, fixed_abs, tag = 'smem constant byte address 0x4 - core index']
  #allocation1 [shape = 'u32[144,128]{1,0:T(1,128)}', space=vmem, size = 0x12000, scoped, tag = 'internal scratch']
  #allocation2 [shape = 'f32[2,1024]{1,0:T(2,128)}', space=vmem, size = 0x2000, scoped, tag = 'scratch operand']
  #allocation3 [shape = 'f32[2,6,1024]{2,1,0:T(8,128)}', space=vmem, size = 0x10000, scoped, tag = 'scratch operand']
  %s0 = inlined_call_operand.vmem [shape: f32[4,2,2048], index: 0, kind: input, shape index: {}]
  %s1 = inlined_call_operand.vmem [shape: f32[2,2,6,2048], index: 1, kind: input, shape index: {}]
  %s2 = inlined_call_operand.hbm [shape: f32[2,8,128], index: 2, kind: output, shape index: {0}]
  %s3 = inlined_call_operand.hbm [shape: f32[2,8,128], index: 3, kind: output, shape index: {1}]
  %4 = xla_tuple %s2, %s3
  %s5 = sld [smem:[#allocation0]]
  $region103: #{tpu_custom_call.1} parent=0
    _
  %s7 = ssub.s32 1, %s5
  %s8 = scalar_select 0, %s7, %s5
  $region1: #{tpu_custom_call.1} parent=0
    #allocation4 [shape = 'u8[65536]{0}', space=vmem, size = 0x10000, scoped, tag = 'input window, operand 0']
    #allocation5 [shape = 'u8[262144]{0}', space=vmem, size = 0x40000, scoped, tag = 'input window, operand 1']
    #allocation6 [shape = 'u8[8192]{0}', space=vmem, size = 0x2000, scoped, tag = 'output window, operand 0']
    #allocation7 [shape = 's32[2]{0}', space=sflag, size = 0x8, scoped, tag = 'scoped memory for tpu_custom_call.1']
    #allocation8 [shape = 'u8[8192]{0}', space=vmem, size = 0x2000, scoped, tag = 'output window, operand 1']
    #allocation9 [shape = 's32[2]{0}', space=sflag, size = 0x8, scoped, tag = 'scoped memory for tpu_custom_call.1']
    %9 = vsyncpa [#allocation7], 0
    %s10 = scalar_lea.sflag [#allocation7], 1
    %11 = vsyncpa %s10, 0
    %12 = vsyncpa [#allocation9], 0
    %s13 = scalar_lea.sflag [#allocation9], 1
    %14 = vsyncpa %s13, 0
    loop: start=0, step=1, limit=4
    $region2: #{tpu_custom_call.1} parent=1 // loop_pre_header
      _
    $region3: #{tpu_custom_call.1} parent=1 // loop_header
      %s16 = sphi 0, %s20
      %p17 = scmp.ge.s32.totalorder %s16, 4
      %s23 = sphi 0, %s35
      %s24 = sphi 0, %s31
      %s25 = sphi 0, %s23
      %s26 = sphi 0, %s24
      %s27 = sphi 0, %s25
      %s28 = sphi 0, %s26
      %s40 = sphi 0, %s42
      %s43 = sphi 0, %s40
      %s44 = sphi 0, %s43
      %s60 = sphi 0, %s44
      %s68 = sphi 0, %s70
      %s71 = sphi 0, %s68
      %s72 = sphi 0, %s71
      %s88 = sphi 0, %s72
      %s94 = sphi 0, %s96
      %s97 = sphi 0, %s94
      %s98 = sphi 0, %s97
      %s114 = sphi 0, %s98
      %s120 = sphi 0, %s122
      %s123 = sphi 0, %s120
      %s124 = sphi 0, %s123
      %s140 = sphi 0, %s124
    $region4: #{tpu_custom_call.1} parent=1 // loop_header_branch
      %19 = sbr.rel (%p17) target = $region8
    $region5: #{tpu_custom_call.1} parent=1 // loop_body
      %s21 = ssub.s32 %s16, 1
      %s22 = ssub.s32 %s16, 2
      %s29 = sadd.s32 1, %s24
      %p30 = scmp.ge.s32.totalorder %s29, 1
      %s31 = scalar_select %p30, 0, %s29
      %s32 = sadd.s32 1, %s23
      %s33 = scalar_select %p30, %s32, %s23
      %p34 = scmp.ge.s32.totalorder %s33, 2
      %s35 = scalar_select %p34, 0, %s33
      %s36 = sadd.s32 %s23, %s24
      %s37 = sadd.s32 %s35, %s31
      %s38 = ssub.s32 %s36, %s37
      %p39 = scmp.eq.s32.totalorder %s38, 0
      %s41 = sadd.s32 %s40, 1
      %s42 = scalar_select %p39, %s40, %s41
      %p45 = pneg %p39
      %p46 = scmp.eq.s32.totalorder %s16, 1
      %p47 = por %p45, %p46
      %p48 = scmp.ne.s32.totalorder %s40, %s43
      %p49 = scmp.eq.s32.totalorder %s16, 0
      %p50 = por %p48, %p49
      %p51 = scmp.ne.s32.totalorder %s40, %s43
      %p52 = scmp.eq.s32.totalorder %s21, 1
      %p53 = por %p51, %p52
      %p54 = scmp.ne.s32.totalorder %s43, %s44
      %p55 = scmp.eq.s32.totalorder %s21, 0
      %p56 = por %p54, %p55
      %p57 = scmp.ne.s32.totalorder %s43, %s44
      %p58 = scmp.eq.s32.totalorder %s22, 1
      %p59 = por %p57, %p58
      %p61 = scmp.ne.s32.totalorder %s44, %s60
      %p62 = scmp.eq.s32.totalorder %s22, 0
      %p63 = por %p61, %p62
      %s64 = sadd.s32 %s23, %s24
      %s65 = sadd.s32 %s35, %s31
      %s66 = ssub.s32 %s64, %s65
      %p67 = scmp.eq.s32.totalorder %s66, 0
      %s69 = sadd.s32 %s68, 1
      %s70 = scalar_select %p67, %s68, %s69
      %p73 = pneg %p67
      %p74 = scmp.eq.s32.totalorder %s16, 1
      %p75 = por %p73, %p74
      %p76 = scmp.ne.s32.totalorder %s68, %s71
      %p77 = scmp.eq.s32.totalorder %s16, 0
      %p78 = por %p76, %p77
      %p79 = scmp.ne.s32.totalorder %s68, %s71
      %p80 = scmp.eq.s32.totalorder %s21, 1
      %p81 = por %p79, %p80
      %p82 = scmp.ne.s32.totalorder %s71, %s72
      %p83 = scmp.eq.s32.totalorder %s21, 0
      %p84 = por %p82, %p83
      %p85 = scmp.ne.s32.totalorder %s71, %s72
      %p86 = scmp.eq.s32.totalorder %s22, 1
      %p87 = por %p85, %p86
      %p89 = scmp.ne.s32.totalorder %s72, %s88
      %p90 = scmp.eq.s32.totalorder %s22, 0
      %p91 = por %p89, %p90
      %s92 = ssub.s32 %s23, %s35
      %p93 = scmp.eq.s32.totalorder %s92, 0
      %s95 = sadd.s32 %s94, 1
      %s96 = scalar_select %p93, %s94, %s95
      %p99 = pneg %p93
      %p100 = scmp.eq.s32.totalorder %s16, 1
      %p101 = por %p99, %p100
      %p102 = scmp.ne.s32.totalorder %s94, %s97
      %p103 = scmp.eq.s32.totalorder %s16, 0
      %p104 = por %p102, %p103
      %p105 = scmp.ne.s32.totalorder %s94, %s97
      %p106 = scmp.eq.s32.totalorder %s21, 1
      %p107 = por %p105, %p106
      %p108 = scmp.ne.s32.totalorder %s97, %s98
      %p109 = scmp.eq.s32.totalorder %s21, 0
      %p110 = por %p108, %p109
      %p111 = scmp.ne.s32.totalorder %s97, %s98
      %p112 = scmp.eq.s32.totalorder %s22, 1
      %p113 = por %p111, %p112
      %p115 = scmp.ne.s32.totalorder %s98, %s114
      %p116 = scmp.eq.s32.totalorder %s22, 0
      %p117 = por %p115, %p116
      %s118 = ssub.s32 %s23, %s35
      %p119 = scmp.eq.s32.totalorder %s118, 0
      %s121 = sadd.s32 %s120, 1
      %s122 = scalar_select %p119, %s120, %s121
      %p125 = pneg %p119
      %p126 = scmp.eq.s32.totalorder %s16, 1
      %p127 = por %p125, %p126
      %p128 = scmp.ne.s32.totalorder %s120, %s123
      %p129 = scmp.eq.s32.totalorder %s16, 0
      %p130 = por %p128, %p129
      %p131 = scmp.ne.s32.totalorder %s120, %s123
      %p132 = scmp.eq.s32.totalorder %s21, 1
      %p133 = por %p131, %p132
      %p134 = scmp.ne.s32.totalorder %s123, %s124
      %p135 = scmp.eq.s32.totalorder %s21, 0
      %p136 = por %p134, %p135
      %p137 = scmp.ne.s32.totalorder %s123, %s124
      %p138 = scmp.eq.s32.totalorder %s22, 1
      %p139 = por %p137, %p138
      %p141 = scmp.ne.s32.totalorder %s124, %s140
      %p142 = scmp.eq.s32.totalorder %s22, 0
      %p143 = por %p141, %p142
      %p144 = scmp.le.s32.totalorder 1, %s16
      %p145 = scmp.lt.s32.totalorder %s16, 3
      %p146 = pnand %p144, %p145
      %p147 = pneg %p146
      // Predicated region
      $region9: #{tpu_custom_call.1} parent=5 // pred_check
        _
      $region10: #{tpu_custom_call.1} parent=5 // pred_check_branch
        %149 = sbr.rel (%p146) target = $region12
      $region11: #{tpu_custom_call.1} parent=5 // pred_region
        %s150 = ssub.s32 %s16, 1
      $region12: #{tpu_custom_call.1} parent=5 // pred_fallthru
        _
      %p151 = scmp.lt.s32.totalorder %s16, 2
      // Predicated region
      $region13: #{tpu_custom_call.1} parent=5 // pred_check
        %p152 = pneg %p151
      $region14: #{tpu_custom_call.1} parent=5 // pred_check_branch
        %154 = sbr.rel (%p152) target = $region16
      $region15: #{tpu_custom_call.1} parent=5 // pred_region
        // Predicated region
        $region17: #{tpu_custom_call.1} parent=15 // pred_check
          %p155 = pneg %p50
        $region18: #{tpu_custom_call.1} parent=15 // pred_check_branch
          %157 = sbr.rel (%p155) target = $region20
        $region19: #{tpu_custom_call.1} parent=15 // pred_region
          %s158 = sand.u32 %s40, 1
          %s159 = sand.u32 %s40, 1
          %s160 = smul.addr %s159, 64
          %s161 = scalar_lea.vmem [#allocation4], %s160
          %s162 = sadd.s32 %s23, %s24
          %s163 = smul.u32 8, %s162
          %s164 = smul.addr %s163, 2
          %s165 = scalar_lea.vmem %s0, %s164
          // Predicated region
          $region21: #{tpu_custom_call.1} parent=19 // pred_check
            _
          $region22: #{tpu_custom_call.1} parent=19 // pred_check_branch
            %167 = sbr.rel (0) target = $region24
          $region23: #{tpu_custom_call.1} parent=19 // pred_region
            // Predicated region
            $region25: #{tpu_custom_call.1} parent=23 // pred_check
              _
            $region26: #{tpu_custom_call.1} parent=23 // pred_check_branch
              %169 = sbr.rel (0) target = $region28
            $region27: #{tpu_custom_call.1} parent=23 // pred_region
              loop: start=0, step=1, limit=1
              $region29: #{tpu_custom_call.1} parent=27 // loop_pre_header
                _
              $region30: #{tpu_custom_call.1} parent=27 // loop_header
                %s171 = sphi 0, %s175
                %p172 = scmp.ge.s32.totalorder %s171, 1
                %s176 = sphi %s165, %s165
                %s177 = sphi %s161, %s161
              $region31: #{tpu_custom_call.1} parent=27 // loop_header_branch
                %174 = sbr.rel (%p172) target = $region35
              $region32: #{tpu_custom_call.1} parent=27 // loop_body
                %v178 = vld [vmem:[%s176] sm:$0xff]
                %179 = vst [vmem:[%s177] sm:$0xff] %v178
                %v180 = vld [vmem:[%s176 + $0x8] sm:$0xff]
                %181 = vst [vmem:[%s177 + $0x8] sm:$0xff] %v180
                %v182 = vld [vmem:[%s176 + $0x20] sm:$0xff]
                %183 = vst [vmem:[%s177 + $0x10] sm:$0xff] %v182
                %v184 = vld [vmem:[%s176 + $0x28] sm:$0xff]
                %185 = vst [vmem:[%s177 + $0x18] sm:$0xff] %v184
                %v186 = vld [vmem:[%s176 + $0x40] sm:$0xff]
                %187 = vst [vmem:[%s177 + $0x20] sm:$0xff] %v186
                %v188 = vld [vmem:[%s176 + $0x48] sm:$0xff]
                %189 = vst [vmem:[%s177 + $0x28] sm:$0xff] %v188
                %v190 = vld [vmem:[%s176 + $0x60] sm:$0xff]
                %191 = vst [vmem:[%s177 + $0x30] sm:$0xff] %v190
                %v192 = vld [vmem:[%s176 + $0x68] sm:$0xff]
                %193 = vst [vmem:[%s177 + $0x38] sm:$0xff] %v192
              $region33: #{tpu_custom_call.1} parent=27 // loop_footer
                %s175 = sadd.s32 1, %s171
              $region34: #{tpu_custom_call.1} parent=27 // loop_footer_branch
                %170 = sbr.rel target = $region30
              $region35: #{tpu_custom_call.1} parent=27 // loop_exit
                _
            $region28: #{tpu_custom_call.1} parent=23 // pred_fallthru
              _
            // Predicated region
            $region36: #{tpu_custom_call.1} parent=23 // pred_check
              _
            $region37: #{tpu_custom_call.1} parent=23 // pred_check_branch
              %195 = sbr.rel target = $region39
            $region38: #{tpu_custom_call.1} parent=23 // pred_region
              _
            $region39: #{tpu_custom_call.1} parent=23 // pred_fallthru
              _
          $region24: #{tpu_custom_call.1} parent=19 // pred_fallthru
            _
          %196 = vnop
        $region20: #{tpu_custom_call.1} parent=15 // pred_fallthru
          _
        // Predicated region
        $region40: #{tpu_custom_call.1} parent=15 // pred_check
          %p197 = pneg %p78
        $region41: #{tpu_custom_call.1} parent=15 // pred_check_branch
          %199 = sbr.rel (%p197) target = $region43
        $region42: #{tpu_custom_call.1} parent=15 // pred_region
          %s200 = sand.u32 %s68, 1
          %s201 = sand.u32 %s68, 1
          %s202 = smul.addr %s201, 256
          %s203 = scalar_lea.vmem [#allocation5], %s202
          %s204 = sadd.s32 %s23, %s24
          %s205 = smul.u32 8, %s204
          %s206 = smul.addr %s205, 8
          %s207 = scalar_lea.vmem %s1, %s206
          // Predicated region
          $region44: #{tpu_custom_call.1} parent=42 // pred_check
            _
          $region45: #{tpu_custom_call.1} parent=42 // pred_check_branch
            %209 = sbr.rel (0) target = $region47
          $region46: #{tpu_custom_call.1} parent=42 // pred_region
            // Predicated region
            $region48: #{tpu_custom_call.1} parent=46 // pred_check
              _
            $region49: #{tpu_custom_call.1} parent=46 // pred_check_branch
              %211 = sbr.rel (0) target = $region51
            $region50: #{tpu_custom_call.1} parent=46 // pred_region
              loop: start=0, step=1, limit=1
              $region52: #{tpu_custom_call.1} parent=50 // loop_pre_header
                _
              $region53: #{tpu_custom_call.1} parent=50 // loop_header
                %s213 = sphi 0, %s217
                %p214 = scmp.ge.s32.totalorder %s213, 1
                %s218 = sphi %s207, %s207
                %s219 = sphi %s203, %s203
              $region54: #{tpu_custom_call.1} parent=50 // loop_header_branch
                %216 = sbr.rel (%p214) target = $region58
              $region55: #{tpu_custom_call.1} parent=50 // loop_body
                %v220 = vld [vmem:[%s218] sm:$0xff]
                %221 = vst [vmem:[%s219] sm:$0xff] %v220
                %v222 = vld [vmem:[%s218 + $0x8] sm:$0xff]
                %223 = vst [vmem:[%s219 + $0x8] sm:$0xff] %v222
                %v224 = vld [vmem:[%s218 + $0x10] sm:$0xff]
                %225 = vst [vmem:[%s219 + $0x10] sm:$0xff] %v224
                %v226 = vld [vmem:[%s218 + $0x18] sm:$0xff]
                %227 = vst [vmem:[%s219 + $0x18] sm:$0xff] %v226
                %v228 = vld [vmem:[%s218 + $0x20] sm:$0xff]
                %229 = vst [vmem:[%s219 + $0x20] sm:$0xff] %v228
                %v230 = vld [vmem:[%s218 + $0x28] sm:$0xff]
                %231 = vst [vmem:[%s219 + $0x28] sm:$0xff] %v230
                %v232 = vld [vmem:[%s218 + $0x30] sm:$0xff]
                %233 = vst [vmem:[%s219 + $0x30] sm:$0xff] %v232
                %v234 = vld [vmem:[%s218 + $0x38] sm:$0xff]
                %235 = vst [vmem:[%s219 + $0x38] sm:$0xff] %v234
                %v236 = vld [vmem:[%s218 + $0x80] sm:$0xff]
                %237 = vst [vmem:[%s219 + $0x40] sm:$0xff] %v236
                %v238 = vld [vmem:[%s218 + $0x88] sm:$0xff]
                %239 = vst [vmem:[%s219 + $0x48] sm:$0xff] %v238
                %v240 = vld [vmem:[%s218 + $0x90] sm:$0xff]
                %241 = vst [vmem:[%s219 + $0x50] sm:$0xff] %v240
                %v242 = vld [vmem:[%s218 + $0x98] sm:$0xff]
                %243 = vst [vmem:[%s219 + $0x58] sm:$0xff] %v242
                %v244 = vld [vmem:[%s218 + $0xa0] sm:$0xff]
                %245 = vst [vmem:[%s219 + $0x60] sm:$0xff] %v244
                %v246 = vld [vmem:[%s218 + $0xa8] sm:$0xff]
                %247 = vst [vmem:[%s219 + $0x68] sm:$0xff] %v246
                %v248 = vld [vmem:[%s218 + $0xb0] sm:$0xff]
                %249 = vst [vmem:[%s219 + $0x70] sm:$0xff] %v248
                %v250 = vld [vmem:[%s218 + $0xb8] sm:$0xff]
                %251 = vst [vmem:[%s219 + $0x78] sm:$0xff] %v250
                %v252 = vld [vmem:[%s218 + $0x100] sm:$0xff]
                %253 = vst [vmem:[%s219 + $0x80] sm:$0xff] %v252
                %v254 = vld [vmem:[%s218 + $0x108] sm:$0xff]
                %255 = vst [vmem:[%s219 + $0x88] sm:$0xff] %v254
                %v256 = vld [vmem:[%s218 + $0x110] sm:$0xff]
                %257 = vst [vmem:[%s219 + $0x90] sm:$0xff] %v256
                %v258 = vld [vmem:[%s218 + $0x118] sm:$0xff]
                %259 = vst [vmem:[%s219 + $0x98] sm:$0xff] %v258
                %v260 = vld [vmem:[%s218 + $0x120] sm:$0xff]
                %261 = vst [vmem:[%s219 + $0xa0] sm:$0xff] %v260
                %v262 = vld [vmem:[%s218 + $0x128] sm:$0xff]
                %263 = vst [vmem:[%s219 + $0xa8] sm:$0xff] %v262
                %v264 = vld [vmem:[%s218 + $0x130] sm:$0xff]
                %265 = vst [vmem:[%s219 + $0xb0] sm:$0xff] %v264
                %v266 = vld [vmem:[%s218 + $0x138] sm:$0xff]
                %267 = vst [vmem:[%s219 + $0xb8] sm:$0xff] %v266
                %v268 = vld [vmem:[%s218 + $0x180] sm:$0xff]
                %269 = vst [vmem:[%s219 + $0xc0] sm:$0xff] %v268
                %v270 = vld [vmem:[%s218 + $0x188] sm:$0xff]
                %271 = vst [vmem:[%s219 + $0xc8] sm:$0xff] %v270
                %v272 = vld [vmem:[%s218 + $0x190] sm:$0xff]
                %273 = vst [vmem:[%s219 + $0xd0] sm:$0xff] %v272
                %v274 = vld [vmem:[%s218 + $0x198] sm:$0xff]
                %275 = vst [vmem:[%s219 + $0xd8] sm:$0xff] %v274
                %v276 = vld [vmem:[%s218 + $0x1a0] sm:$0xff]
                %277 = vst [vmem:[%s219 + $0xe0] sm:$0xff] %v276
                %v278 = vld [vmem:[%s218 + $0x1a8] sm:$0xff]
                %279 = vst [vmem:[%s219 + $0xe8] sm:$0xff] %v278
                %v280 = vld [vmem:[%s218 + $0x1b0] sm:$0xff]
                %281 = vst [vmem:[%s219 + $0xf0] sm:$0xff] %v280
                %v282 = vld [vmem:[%s218 + $0x1b8] sm:$0xff]
                %283 = vst [vmem:[%s219 + $0xf8] sm:$0xff] %v282
              $region56: #{tpu_custom_call.1} parent=50 // loop_footer
                %s217 = sadd.s32 1, %s213
              $region57: #{tpu_custom_call.1} parent=50 // loop_footer_branch
                %212 = sbr.rel target = $region53
              $region58: #{tpu_custom_call.1} parent=50 // loop_exit
                _
            $region51: #{tpu_custom_call.1} parent=46 // pred_fallthru
              _
            // Predicated region
            $region59: #{tpu_custom_call.1} parent=46 // pred_check
              _
            $region60: #{tpu_custom_call.1} parent=46 // pred_check_branch
              %285 = sbr.rel target = $region62
            $region61: #{tpu_custom_call.1} parent=46 // pred_region
              _
            $region62: #{tpu_custom_call.1} parent=46 // pred_fallthru
              _
          $region47: #{tpu_custom_call.1} parent=42 // pred_fallthru
            _
          %286 = vnop
        $region43: #{tpu_custom_call.1} parent=15 // pred_fallthru
          _
      $region16: #{tpu_custom_call.1} parent=5 // pred_fallthru
        _
      %p287 = scmp.le.s32.totalorder 1, %s16
      %p288 = scmp.lt.s32.totalorder %s16, 3
      %p289 = pnand %p287, %p288
      %p290 = pneg %p289
      // Predicated region
      $region63: #{tpu_custom_call.1} parent=5 // pred_check
        _
      $region64: #{tpu_custom_call.1} parent=5 // pred_check_branch
        %292 = sbr.rel (%p289) target = $region66
      $region65: #{tpu_custom_call.1} parent=5 // pred_region
        %s293 = ssub.s32 %s16, 1
        %s294 = sand.u32 %s43, 1
        %s295 = sand.u32 %s43, 1
        %s296 = smul.addr %s295, 64
        %s297 = scalar_lea.vmem [#allocation4], %s296
        // Predicated region
        $region67: #{tpu_custom_call.1} parent=65 // pred_check
          %p298 = pneg %p56
        $region68: #{tpu_custom_call.1} parent=65 // pred_check_branch
          %300 = sbr.rel (%p298) target = $region70
        $region69: #{tpu_custom_call.1} parent=65 // pred_region
          _
        $region70: #{tpu_custom_call.1} parent=65 // pred_fallthru
          _
        %s301 = sand.u32 %s71, 1
        %s302 = sand.u32 %s71, 1
        %s303 = smul.addr %s302, 256
        %s304 = scalar_lea.vmem [#allocation5], %s303
        // Predicated region
        $region71: #{tpu_custom_call.1} parent=65 // pred_check
          %p305 = pneg %p84
        $region72: #{tpu_custom_call.1} parent=65 // pred_check_branch
          %307 = sbr.rel (%p305) target = $region74
        $region73: #{tpu_custom_call.1} parent=65 // pred_region
          _
        $region74: #{tpu_custom_call.1} parent=65 // pred_fallthru
          _
        %s308 = sand.u32 %s43, 1
        %s309 = sand.u32 %s43, 1
        %s310 = smul.addr %s309, 64
        %s311 = scalar_lea.vmem [#allocation4], %s310
        %p312 = pneg %p56
        %p313 = pneg %p53
        %s314 = sand.u32 %s71, 1
        %s315 = sand.u32 %s71, 1
        %s316 = smul.addr %s315, 256
        %s317 = scalar_lea.vmem [#allocation5], %s316
        %p318 = pneg %p84
        %p319 = pneg %p81
        %p320 = pneg %p110
        %p321 = pneg %p107
        %s322 = sand.u32 %s97, 1
        %s323 = scalar_lea.sflag [#allocation7], %s322
        %s324 = sand.u32 %s97, 1
        %s325 = smul.addr %s324, 8
        %s326 = scalar_lea.vmem [#allocation6], %s325
        %p327 = pneg %p136
        %p328 = pneg %p133
        %s329 = sand.u32 %s123, 1
        %s330 = scalar_lea.sflag [#allocation9], %s329
        %s331 = sand.u32 %s123, 1
        %s332 = smul.addr %s331, 8
        %s333 = scalar_lea.vmem [#allocation8], %s332
        %s334 = sadd.s32 %s25, %s26
        %s335 = smul.u32 8, %s334
        %s336 = sadd.s32 %s25, %s26
        %s337 = smul.u32 8, %s336
        %p338 = scmp.eq.s32.totalorder %s26, 0
        // Predicated region
        $region75: #{tpu_custom_call.1} parent=65 // pred_check
          %p339 = pneg %p338
        $region76: #{tpu_custom_call.1} parent=65 // pred_check_branch
          %341 = sbr.rel (%p339) target = $region78
        $region77: #{tpu_custom_call.1} parent=65 // pred_region
          %342 = vst [vmem:[#allocation2] sm:$0xff] 0.0
          %343 = vst [vmem:[#allocation2 + $0x8] sm:$0xff] 0.0
          %344 = vst [vmem:[#allocation3] sm:$0x3f] 0.0
          %345 = vst [vmem:[#allocation3 + $0x8] sm:$0x3f] 0.0
          %346 = vst [vmem:[#allocation3 + $0x10] sm:$0x3f] 0.0
          %347 = vst [vmem:[#allocation3 + $0x18] sm:$0x3f] 0.0
          %348 = vst [vmem:[#allocation3 + $0x20] sm:$0x3f] 0.0
          %349 = vst [vmem:[#allocation3 + $0x28] sm:$0x3f] 0.0
          %350 = vst [vmem:[#allocation3 + $0x30] sm:$0x3f] 0.0
          %351 = vst [vmem:[#allocation3 + $0x38] sm:$0x3f] 0.0
          %352 = vst [vmem:[#allocation3 + $0x40] sm:$0x3f] 0.0
          %353 = vst [vmem:[#allocation3 + $0x48] sm:$0x3f] 0.0
          %354 = vst [vmem:[#allocation3 + $0x50] sm:$0x3f] 0.0
          %355 = vst [vmem:[#allocation3 + $0x58] sm:$0x3f] 0.0
          %356 = vst [vmem:[#allocation3 + $0x60] sm:$0x3f] 0.0
          %357 = vst [vmem:[#allocation3 + $0x68] sm:$0x3f] 0.0
          %358 = vst [vmem:[#allocation3 + $0x70] sm:$0x3f] 0.0
          %359 = vst [vmem:[#allocation3 + $0x78] sm:$0x3f] 0.0
        $region78: #{tpu_custom_call.1} parent=65 // pred_fallthru
          _
        %v360 = vld [vmem:[%s297] sm:$0xff]
        %v361 = vld [vmem:[%s297 + $0x8] sm:$0xff]
        %s362 = scalar_lea.vmem %s297, 16 [#allocation4]
        %v363 = vld [vmem:[%s362] sm:$0xff]
        %v364 = vld [vmem:[%s362 + $0x8] sm:$0xff]
        %s365 = scalar_lea.vmem %s297, 32 [#allocation4]
        %v366 = vld [vmem:[%s365] sm:$0xff]
        %v367 = vld [vmem:[%s365 + $0x8] sm:$0xff]
        %s368 = scalar_lea.vmem %s297, 48 [#allocation4]
        %v369 = vld [vmem:[%s368] sm:$0xff]
        %v370 = vld [vmem:[%s368 + $0x8] sm:$0xff]
        %v371 = vmax.f32 %v360, 0.0
        %v372 = vmax.f32 %v361, 0.0
        %v373 = vmul.f32 %v360, %v363
        %v374 = vmul.f32 %v361, %v364
        %v375 = vsub.f32 %v371, %v373
        %v376 = vsub.f32 %v372, %v374
        %v377 = vand.u32 2147483647, %v360
        %v378 = vand.u32 2147483647, %v361
        %v379 = vsub.f32 0.0, %v377
        %v380 = vsub.f32 0.0, %v378
        %v381 = vmul.f32 %v379, 1.442695
        %v382 = vpow.pop %v381
        %v383 = vmul.f32 %v380, 1.442695
        %v384 = vpow.pop %v383
        %v385 = vadd.f32 %v382, 1.0
        %v386 = vlog2.pop %v385
        %v387 = vmul.f32 %v386, 0.6931472
        %v388 = vmul.f32 -0.5, %v382
        %v389 = vadd.f32 %v388, 1.0
        %v390 = vmul.f32 %v389, %v382
        %v391 = vand.u32 2147483647, %v382
        %vm392 = vcmp.lt.f32.partialorder %v391, 0.0004427343
        %v393 = vsel %vm392, %v390, %v387
        %v394 = vadd.f32 %v384, 1.0
        %v395 = vlog2.pop %v394
        %v396 = vmul.f32 %v395, 0.6931472
        %v397 = vmul.f32 -0.5, %v384
        %v398 = vadd.f32 %v397, 1.0
        %v399 = vmul.f32 %v398, %v384
        %v400 = vand.u32 2147483647, %v384
        %vm401 = vcmp.lt.f32.partialorder %v400, 0.0004427343
        %v402 = vsel %vm401, %v399, %v396
        %v403 = vadd.f32 %v375, %v393
        %v404 = vadd.f32 %v376, %v402
        %v405 = vld [vmem:[#allocation2] sm:$0xff]
        %v406 = vld [vmem:[#allocation2 + $0x8] sm:$0xff]
        %v407 = vmul.f32 %v366, %v403
        %v408 = vmul.f32 %v367, %v404
        %v409 = vadd.f32 %v405, %v407
        %v410 = vadd.f32 %v406, %v408
        %411 = vst [vmem:[#allocation2] sm:$0xff] %v409
        %412 = vst [vmem:[#allocation2 + $0x8] sm:$0xff] %v410
        %v413 = vld [vmem:[%s304] sm:$0x3f]
        %v414 = vld [vmem:[%s304 + $0x8] sm:$0x3f]
        %v415 = vld [vmem:[%s304 + $0x10] sm:$0x3f]
        %v416 = vld [vmem:[%s304 + $0x18] sm:$0x3f]
        %v417 = vld [vmem:[%s304 + $0x20] sm:$0x3f]
        %v418 = vld [vmem:[%s304 + $0x28] sm:$0x3f]
        %v419 = vld [vmem:[%s304 + $0x30] sm:$0x3f]
        %v420 = vld [vmem:[%s304 + $0x38] sm:$0x3f]
        %v421 = vld [vmem:[%s304 + $0x40] sm:$0x3f]
        %v422 = vld [vmem:[%s304 + $0x48] sm:$0x3f]
        %v423 = vld [vmem:[%s304 + $0x50] sm:$0x3f]
        %v424 = vld [vmem:[%s304 + $0x58] sm:$0x3f]
        %v425 = vld [vmem:[%s304 + $0x60] sm:$0x3f]
        %v426 = vld [vmem:[%s304 + $0x68] sm:$0x3f]
        %v427 = vld [vmem:[%s304 + $0x70] sm:$0x3f]
        %v428 = vld [vmem:[%s304 + $0x78] sm:$0x3f]
        %s429 = scalar_lea.vmem %s304, 128 [#allocation5]
        %v430 = vld [vmem:[%s429] sm:$0x3f]
        %v431 = vld [vmem:[%s429 + $0x8] sm:$0x3f]
        %v432 = vld [vmem:[%s429 + $0x10] sm:$0x3f]
        %v433 = vld [vmem:[%s429 + $0x18] sm:$0x3f]
        %v434 = vld [vmem:[%s429 + $0x20] sm:$0x3f]
        %v435 = vld [vmem:[%s429 + $0x28] sm:$0x3f]
        %v436 = vld [vmem:[%s429 + $0x30] sm:$0x3f]
        %v437 = vld [vmem:[%s429 + $0x38] sm:$0x3f]
        %v438 = vld [vmem:[%s429 + $0x40] sm:$0x3f]
        %v439 = vld [vmem:[%s429 + $0x48] sm:$0x3f]
        %v440 = vld [vmem:[%s429 + $0x50] sm:$0x3f]
        %v441 = vld [vmem:[%s429 + $0x58] sm:$0x3f]
        %v442 = vld [vmem:[%s429 + $0x60] sm:$0x3f]
        %v443 = vld [vmem:[%s429 + $0x68] sm:$0x3f]
        %v444 = vld [vmem:[%s429 + $0x70] sm:$0x3f]
        %v445 = vld [vmem:[%s429 + $0x78] sm:$0x3f]
        %v446 = vsub.f32 %v413, %v430
        %v447 = vsub.f32 %v414, %v431
        %v448 = vsub.f32 %v415, %v432
        %v449 = vsub.f32 %v416, %v433
        %v450 = vsub.f32 %v417, %v434
        %v451 = vsub.f32 %v418, %v435
        %v452 = vsub.f32 %v419, %v436
        %v453 = vsub.f32 %v420, %v437
        %v454 = vsub.f32 %v421, %v438
        %v455 = vsub.f32 %v422, %v439
        %v456 = vsub.f32 %v423, %v440
        %v457 = vsub.f32 %v424, %v441
        %v458 = vsub.f32 %v425, %v442
        %v459 = vsub.f32 %v426, %v443
        %v460 = vsub.f32 %v427, %v444
        %v461 = vsub.f32 %v428, %v445
        %v462 = vand.u32 2147483647, %v446
        %v463 = vand.u32 2147483647, %v447
        %v464 = vand.u32 2147483647, %v448
        %v465 = vand.u32 2147483647, %v449
        %v466 = vand.u32 2147483647, %v450
        %v467 = vand.u32 2147483647, %v451
        %v468 = vand.u32 2147483647, %v452
        %v469 = vand.u32 2147483647, %v453
        %v470 = vand.u32 2147483647, %v454
        %v471 = vand.u32 2147483647, %v455
        %v472 = vand.u32 2147483647, %v456
        %v473 = vand.u32 2147483647, %v457
        %v474 = vand.u32 2147483647, %v458
        %v475 = vand.u32 2147483647, %v459
        %v476 = vand.u32 2147483647, %v460
        %v477 = vand.u32 2147483647, %v461
        %vm478 = vcmp.lt.f32.partialorder %v462, 0.11111111
        %vm479 = vcmp.lt.f32.partialorder %v463, 0.11111111
        %vm480 = vcmp.lt.f32.partialorder %v464, 0.11111111
        %vm481 = vcmp.lt.f32.partialorder %v465, 0.11111111
        %vm482 = vcmp.lt.f32.partialorder %v466, 0.11111111
        %vm483 = vcmp.lt.f32.partialorder %v467, 0.11111111
        %vm484 = vcmp.lt.f32.partialorder %v468, 0.11111111
        %vm485 = vcmp.lt.f32.partialorder %v469, 0.11111111
        %vm486 = vcmp.lt.f32.partialorder %v470, 0.11111111
        %vm487 = vcmp.lt.f32.partialorder %v471, 0.11111111
        %vm488 = vcmp.lt.f32.partialorder %v472, 0.11111111
        %vm489 = vcmp.lt.f32.partialorder %v473, 0.11111111
        %vm490 = vcmp.lt.f32.partialorder %v474, 0.11111111
        %vm491 = vcmp.lt.f32.partialorder %v475, 0.11111111
        %vm492 = vcmp.lt.f32.partialorder %v476, 0.11111111
        %vm493 = vcmp.lt.f32.partialorder %v477, 0.11111111
        %v494 = vsel %vm478, 1, 0
        %v495 = vsel %vm479, 1, 0
        %v496 = vsel %vm480, 1, 0
        %v497 = vsel %vm481, 1, 0
        %v498 = vsel %vm482, 1, 0
        %v499 = vsel %vm483, 1, 0
        %v500 = vsel %vm484, 1, 0
        %v501 = vsel %vm485, 1, 0
        %v502 = vsel %vm486, 1, 0
        %v503 = vsel %vm487, 1, 0
        %v504 = vsel %vm488, 1, 0
        %v505 = vsel %vm489, 1, 0
        %v506 = vsel %vm490, 1, 0
        %v507 = vsel %vm491, 1, 0
        %v508 = vsel %vm492, 1, 0
        %v509 = vsel %vm493, 1, 0
        %v510 = vcvt.s32.f32 %v494
        %v511 = vcvt.s32.f32 %v495
        %v512 = vcvt.s32.f32 %v496
        %v513 = vcvt.s32.f32 %v497
        %v514 = vcvt.s32.f32 %v498
        %v515 = vcvt.s32.f32 %v499
        %v516 = vcvt.s32.f32 %v500
        %v517 = vcvt.s32.f32 %v501
        %v518 = vcvt.s32.f32 %v502
        %v519 = vcvt.s32.f32 %v503
        %v520 = vcvt.s32.f32 %v504
        %v521 = vcvt.s32.f32 %v505
        %v522 = vcvt.s32.f32 %v506
        %v523 = vcvt.s32.f32 %v507
        %v524 = vcvt.s32.f32 %v508
        %v525 = vcvt.s32.f32 %v509
        %v526 = vmul.f32 %v446, %v446
        %v527 = vmul.f32 %v447, %v447
        %v528 = vmul.f32 %v448, %v448
        %v529 = vmul.f32 %v449, %v449
        %v530 = vmul.f32 %v450, %v450
        %v531 = vmul.f32 %v451, %v451
        %v532 = vmul.f32 %v452, %v452
        %v533 = vmul.f32 %v453, %v453
        %v534 = vmul.f32 %v454, %v454
        %v535 = vmul.f32 %v455, %v455
        %v536 = vmul.f32 %v456, %v456
        %v537 = vmul.f32 %v457, %v457
        %v538 = vmul.f32 %v458, %v458
        %v539 = vmul.f32 %v459, %v459
        %v540 = vmul.f32 %v460, %v460
        %v541 = vmul.f32 %v461, %v461
        %v542 = vmul.f32 %v526, 4.5
        %v543 = vmul.f32 %v527, 4.5
        %v544 = vmul.f32 %v528, 4.5
        %v545 = vmul.f32 %v529, 4.5
        %v546 = vmul.f32 %v530, 4.5
        %v547 = vmul.f32 %v531, 4.5
        %v548 = vmul.f32 %v532, 4.5
        %v549 = vmul.f32 %v533, 4.5
        %v550 = vmul.f32 %v534, 4.5
        %v551 = vmul.f32 %v535, 4.5
        %v552 = vmul.f32 %v536, 4.5
        %v553 = vmul.f32 %v537, 4.5
        %v554 = vmul.f32 %v538, 4.5
        %v555 = vmul.f32 %v539, 4.5
        %v556 = vmul.f32 %v540, 4.5
        %v557 = vmul.f32 %v541, 4.5
        %v558 = vmul.f32 %v542, %v510
        %v559 = vmul.f32 %v543, %v511
        %v560 = vmul.f32 %v544, %v512
        %v561 = vmul.f32 %v545, %v513
        %v562 = vmul.f32 %v546, %v514
        %v563 = vmul.f32 %v547, %v515
        %v564 = vmul.f32 %v548, %v516
        %v565 = vmul.f32 %v549, %v517
        %v566 = vmul.f32 %v550, %v518
        %v567 = vmul.f32 %v551, %v519
        %v568 = vmul.f32 %v552, %v520
        %v569 = vmul.f32 %v553, %v521
        %v570 = vmul.f32 %v554, %v522
        %v571 = vmul.f32 %v555, %v523
        %v572 = vmul.f32 %v556, %v524
        %v573 = vmul.f32 %v557, %v525
        %v574 = vsub.f32 %v462, 0.055555556
        %v575 = vsub.f32 %v463, 0.055555556
        %v576 = vsub.f32 %v464, 0.055555556
        %v577 = vsub.f32 %v465, 0.055555556
        %v578 = vsub.f32 %v466, 0.055555556
        %v579 = vsub.f32 %v467, 0.055555556
        %v580 = vsub.f32 %v468, 0.055555556
        %v581 = vsub.f32 %v469, 0.055555556
        %v582 = vsub.f32 %v470, 0.055555556
        %v583 = vsub.f32 %v471, 0.055555556
        %v584 = vsub.f32 %v472, 0.055555556
        %v585 = vsub.f32 %v473, 0.055555556
        %v586 = vsub.f32 %v474, 0.055555556
        %v587 = vsub.f32 %v475, 0.055555556
        %v588 = vsub.f32 %v476, 0.055555556
        %v589 = vsub.f32 %v477, 0.055555556
        %v590 = vsub.f32 1.0, %v510
        %v591 = vsub.f32 1.0, %v511
        %v592 = vsub.f32 1.0, %v512
        %v593 = vsub.f32 1.0, %v513
        %v594 = vsub.f32 1.0, %v514
        %v595 = vsub.f32 1.0, %v515
        %v596 = vsub.f32 1.0, %v516
        %v597 = vsub.f32 1.0, %v517
        %v598 = vsub.f32 1.0, %v518
        %v599 = vsub.f32 1.0, %v519
        %v600 = vsub.f32 1.0, %v520
        %v601 = vsub.f32 1.0, %v521
        %v602 = vsub.f32 1.0, %v522
        %v603 = vsub.f32 1.0, %v523
        %v604 = vsub.f32 1.0, %v524
        %v605 = vsub.f32 1.0, %v525
        %v606 = vmul.f32 %v574, %v590
        %v607 = vmul.f32 %v575, %v591
        %v608 = vmul.f32 %v576, %v592
        %v609 = vmul.f32 %v577, %v593
        %v610 = vmul.f32 %v578, %v594
        %v611 = vmul.f32 %v579, %v595
        %v612 = vmul.f32 %v580, %v596
        %v613 = vmul.f32 %v581, %v597
        %v614 = vmul.f32 %v582, %v598
        %v615 = vmul.f32 %v583, %v599
        %v616 = vmul.f32 %v584, %v600
        %v617 = vmul.f32 %v585, %v601
        %v618 = vmul.f32 %v586, %v602
        %v619 = vmul.f32 %v587, %v603
        %v620 = vmul.f32 %v588, %v604
        %v621 = vmul.f32 %v589, %v605
        %v622 = vadd.f32 %v558, %v606
        %v623 = vadd.f32 %v559, %v607
        %v624 = vadd.f32 %v560, %v608
        %v625 = vadd.f32 %v561, %v609
        %v626 = vadd.f32 %v562, %v610
        %v627 = vadd.f32 %v563, %v611
        %v628 = vadd.f32 %v564, %v612
        %v629 = vadd.f32 %v565, %v613
        %v630 = vadd.f32 %v566, %v614
        %v631 = vadd.f32 %v567, %v615
        %v632 = vadd.f32 %v568, %v616
        %v633 = vadd.f32 %v569, %v617
        %v634 = vadd.f32 %v570, %v618
        %v635 = vadd.f32 %v571, %v619
        %v636 = vadd.f32 %v572, %v620
        %v637 = vadd.f32 %v573, %v621
        %v638 = vld [vmem:[#allocation3] sm:$0x3f]
        %v639 = vld [vmem:[#allocation3 + $0x8] sm:$0x3f]
        %v640 = vld [vmem:[#allocation3 + $0x10] sm:$0x3f]
        %v641 = vld [vmem:[#allocation3 + $0x18] sm:$0x3f]
        %v642 = vld [vmem:[#allocation3 + $0x20] sm:$0x3f]
        %v643 = vld [vmem:[#allocation3 + $0x28] sm:$0x3f]
        %v644 = vld [vmem:[#allocation3 + $0x30] sm:$0x3f]
        %v645 = vld [vmem:[#allocation3 + $0x38] sm:$0x3f]
        %v646 = vld [vmem:[#allocation3 + $0x40] sm:$0x3f]
        %v647 = vld [vmem:[#allocation3 + $0x48] sm:$0x3f]
        %v648 = vld [vmem:[#allocation3 + $0x50] sm:$0x3f]
        %v649 = vld [vmem:[#allocation3 + $0x58] sm:$0x3f]
        %v650 = vld [vmem:[#allocation3 + $0x60] sm:$0x3f]
        %v651 = vld [vmem:[#allocation3 + $0x68] sm:$0x3f]
        %v652 = vld [vmem:[#allocation3 + $0x70] sm:$0x3f]
        %v653 = vld [vmem:[#allocation3 + $0x78] sm:$0x3f]
        %v657 = vunpack.c.l.s4 1966171168
        %v658 = vunpack.c.0.s8 %v657
        %v659 = vlaneseq
        %v660 = vshrl.u32 %v659, 7
        %v661 = vsub.s32 %v658, %v660
        %v662 = vrot.slane %v369, %v661
        %v664 = vunpack.c.l.s4 1966171168
        %v665 = vunpack.c.0.s8 %v664
        %v666 = vlaneseq
        %v667 = vshrl.u32 %v666, 7
        %v668 = vsub.s32 %v665, %v667
        %v669 = vrot.slane %v370, %v668
        %v670 = vcombine.low %v662, %v669
        %v671 = vcombine.high %v662, %v669
        %v672 = vlaneseq
        %v673 = vshrl.u32 %v672, 7
        %v674 = vsub.s32 0, %v673
        %v675 = vrot.slane %v670, %v674
        %v676 = vlaneseq
        %v677 = vshrl.u32 %v676, 7
        %v678 = vsub.s32 1, %v677
        %v679 = vrot.slane %v670, %v678
        %v680 = vlaneseq
        %v681 = vshrl.u32 %v680, 7
        %v682 = vsub.s32 2, %v681
        %v683 = vrot.slane %v670, %v682
        %v684 = vlaneseq
        %v685 = vshrl.u32 %v684, 7
        %v686 = vsub.s32 3, %v685
        %v687 = vrot.slane %v670, %v686
        %v688 = vlaneseq
        %v689 = vshrl.u32 %v688, 7
        %v690 = vsub.s32 4, %v689
        %v691 = vrot.slane %v670, %v690
        %v692 = vlaneseq
        %v693 = vshrl.u32 %v692, 7
        %v694 = vsub.s32 5, %v693
        %v695 = vrot.slane %v670, %v694
        %v696 = vlaneseq
        %v697 = vshrl.u32 %v696, 7
        %v698 = vsub.s32 6, %v697
        %v699 = vrot.slane %v670, %v698
        %v700 = vlaneseq
        %v701 = vshrl.u32 %v700, 7
        %v702 = vsub.s32 7, %v701
        %v703 = vrot.slane %v670, %v702
        %v704 = vlaneseq
        %v705 = vshrl.u32 %v704, 7
        %v706 = vsub.s32 0, %v705
        %v707 = vrot.slane %v671, %v706
        %v708 = vlaneseq
        %v709 = vshrl.u32 %v708, 7
        %v710 = vsub.s32 1, %v709
        %v711 = vrot.slane %v671, %v710
        %v712 = vlaneseq
        %v713 = vshrl.u32 %v712, 7
        %v714 = vsub.s32 2, %v713
        %v715 = vrot.slane %v671, %v714
        %v716 = vlaneseq
        %v717 = vshrl.u32 %v716, 7
        %v718 = vsub.s32 3, %v717
        %v719 = vrot.slane %v671, %v718
        %v720 = vlaneseq
        %v721 = vshrl.u32 %v720, 7
        %v722 = vsub.s32 4, %v721
        %v723 = vrot.slane %v671, %v722
        %v724 = vlaneseq
        %v725 = vshrl.u32 %v724, 7
        %v726 = vsub.s32 5, %v725
        %v727 = vrot.slane %v671, %v726
        %v728 = vlaneseq
        %v729 = vshrl.u32 %v728, 7
        %v730 = vsub.s32 6, %v729
        %v731 = vrot.slane %v671, %v730
        %v732 = vlaneseq
        %v733 = vshrl.u32 %v732, 7
        %v734 = vsub.s32 7, %v733
        %v735 = vrot.slane %v671, %v734
        %v752 = vmul.f32 %v675, %v622
        %v753 = vmul.f32 %v679, %v623
        %v754 = vmul.f32 %v683, %v624
        %v755 = vmul.f32 %v687, %v625
        %v756 = vmul.f32 %v691, %v626
        %v757 = vmul.f32 %v695, %v627
        %v758 = vmul.f32 %v699, %v628
        %v759 = vmul.f32 %v703, %v629
        %v760 = vmul.f32 %v707, %v630
        %v761 = vmul.f32 %v711, %v631
        %v762 = vmul.f32 %v715, %v632
        %v763 = vmul.f32 %v719, %v633
        %v764 = vmul.f32 %v723, %v634
        %v765 = vmul.f32 %v727, %v635
        %v766 = vmul.f32 %v731, %v636
        %v767 = vmul.f32 %v735, %v637
        %v768 = vadd.f32 %v638, %v752
        %v769 = vadd.f32 %v639, %v753
        %v770 = vadd.f32 %v640, %v754
        %v771 = vadd.f32 %v641, %v755
        %v772 = vadd.f32 %v642, %v756
        %v773 = vadd.f32 %v643, %v757
        %v774 = vadd.f32 %v644, %v758
        %v775 = vadd.f32 %v645, %v759
        %v776 = vadd.f32 %v646, %v760
        %v777 = vadd.f32 %v647, %v761
        %v778 = vadd.f32 %v648, %v762
        %v779 = vadd.f32 %v649, %v763
        %v780 = vadd.f32 %v650, %v764
        %v781 = vadd.f32 %v651, %v765
        %v782 = vadd.f32 %v652, %v766
        %v783 = vadd.f32 %v653, %v767
        %784 = vst [vmem:[#allocation3] sm:$0x3f] %v768
        %785 = vst [vmem:[#allocation3 + $0x8] sm:$0x3f] %v769
        %786 = vst [vmem:[#allocation3 + $0x10] sm:$0x3f] %v770
        %787 = vst [vmem:[#allocation3 + $0x18] sm:$0x3f] %v771
        %788 = vst [vmem:[#allocation3 + $0x20] sm:$0x3f] %v772
        %789 = vst [vmem:[#allocation3 + $0x28] sm:$0x3f] %v773
        %790 = vst [vmem:[#allocation3 + $0x30] sm:$0x3f] %v774
        %791 = vst [vmem:[#allocation3 + $0x38] sm:$0x3f] %v775
        %792 = vst [vmem:[#allocation3 + $0x40] sm:$0x3f] %v776
        %793 = vst [vmem:[#allocation3 + $0x48] sm:$0x3f] %v777
        %794 = vst [vmem:[#allocation3 + $0x50] sm:$0x3f] %v778
        %795 = vst [vmem:[#allocation3 + $0x58] sm:$0x3f] %v779
        %796 = vst [vmem:[#allocation3 + $0x60] sm:$0x3f] %v780
        %797 = vst [vmem:[#allocation3 + $0x68] sm:$0x3f] %v781
        %798 = vst [vmem:[#allocation3 + $0x70] sm:$0x3f] %v782
        %799 = vst [vmem:[#allocation3 + $0x78] sm:$0x3f] %v783
        // Predicated region
        $region79: #{tpu_custom_call.1} parent=65 // pred_check
          %p800 = pneg %p338
        $region80: #{tpu_custom_call.1} parent=65 // pred_check_branch
          %802 = sbr.rel (%p800) target = $region82
        $region81: #{tpu_custom_call.1} parent=65 // pred_region
          %v803 = vld [vmem:[#allocation2] sm:$0xff]
          %v804 = vld [vmem:[#allocation2 + $0x8] sm:$0xff]
          %v807 = vcombine.high %v803, %v803
          %v809 = vunpack.c.l.s4 1983009808
          %v810 = vunpack.c.0.s8 %v809
          %v811 = vlaneseq
          %v812 = vshrl.u32 %v811, 7
          %v813 = vsub.s32 %v810, %v812
          %v814 = vrot.slane %v803, %v813
          %v816 = vunpack.c.l.s4 1983009808
          %v817 = vunpack.c.0.s8 %v816
          %v818 = vlaneseq
          %v819 = vshrl.u32 %v818, 7
          %v820 = vsub.s32 %v817, %v819
          %v821 = vrot.slane %v807, %v820
          %v822 = vcombine.high %v814, %v814
          %v823 = vcombine.high %v821, %v821
          %v824 = vcombine.high %v804, %v804
          %v826 = vunpack.c.l.s4 1983009808
          %v827 = vunpack.c.0.s8 %v826
          %v828 = vlaneseq
          %v829 = vshrl.u32 %v828, 7
          %v830 = vsub.s32 %v827, %v829
          %v831 = vrot.slane %v804, %v830
          %v833 = vunpack.c.l.s4 1983009808
          %v834 = vunpack.c.0.s8 %v833
          %v835 = vlaneseq
          %v836 = vshrl.u32 %v835, 7
          %v837 = vsub.s32 %v834, %v836
          %v838 = vrot.slane %v824, %v837
          %v839 = vcombine.high %v831, %v831
          %v840 = vcombine.high %v838, %v838
          %vm849 = vcmask 1041408
          %v850 = vsel %vm849, %v814, 0.0
          %v851 = vsel %vm849, %v822, 0.0
          %v852 = vadd.f32 %v850, %v851
          %v853 = vsel %vm849, %v821, 0.0
          %v854 = vadd.f32 %v852, %v853
          %v855 = vsel %vm849, %v823, 0.0
          %v856 = vadd.f32 %v854, %v855
          %v857 = vsel %vm849, %v831, 0.0
          %v858 = vadd.f32 %v856, %v857
          %v859 = vsel %vm849, %v839, 0.0
          %v860 = vadd.f32 %v858, %v859
          %v861 = vsel %vm849, %v838, 0.0
          %v862 = vadd.f32 %v860, %v861
          %v863 = vsel %vm849, %v840, 0.0
          %v864 = vadd.f32 %v862, %v863
          %865 = vadd.xlane.f32.xlu0 %v864
          %v866 = vpop.xlane.xlu0 %865
          %v867 = vrot.slane %v866, 4
          %v868 = vadd.f32 %v866, %v867
          %v869 = vrot.slane %v868, 2
          %v870 = vadd.f32 %v868, %v869
          %v871 = vrot.slane %v870, 1
          %v872 = vadd.f32 %v870, %v871
          %s873 = vtos %v872
          %v874 = vstv %s873
          %875 = vst [vmem:[%s326] sm:$0xff] %v874
          %v876 = vld [vmem:[#allocation3] sm:$0x3f]
          %v877 = vld [vmem:[#allocation3 + $0x8] sm:$0x3f]
          %v878 = vld [vmem:[#allocation3 + $0x10] sm:$0x3f]
          %v879 = vld [vmem:[#allocation3 + $0x18] sm:$0x3f]
          %v880 = vld [vmem:[#allocation3 + $0x20] sm:$0x3f]
          %v881 = vld [vmem:[#allocation3 + $0x28] sm:$0x3f]
          %v882 = vld [vmem:[#allocation3 + $0x30] sm:$0x3f]
          %v883 = vld [vmem:[#allocation3 + $0x38] sm:$0x3f]
          %v884 = vld [vmem:[#allocation3 + $0x40] sm:$0x3f]
          %v885 = vld [vmem:[#allocation3 + $0x48] sm:$0x3f]
          %v886 = vld [vmem:[#allocation3 + $0x50] sm:$0x3f]
          %v887 = vld [vmem:[#allocation3 + $0x58] sm:$0x3f]
          %v888 = vld [vmem:[#allocation3 + $0x60] sm:$0x3f]
          %v889 = vld [vmem:[#allocation3 + $0x68] sm:$0x3f]
          %v890 = vld [vmem:[#allocation3 + $0x70] sm:$0x3f]
          %v891 = vld [vmem:[#allocation3 + $0x78] sm:$0x3f]
          %vm892 = vcmask 1045504
          %v893 = vsel %vm892, %v876, 0.0
          %v894 = vsel %vm892, %v877, 0.0
          %v895 = vadd.f32 %v893, %v894
          %v896 = vsel %vm892, %v878, 0.0
          %v897 = vadd.f32 %v895, %v896
          %v898 = vsel %vm892, %v879, 0.0
          %v899 = vadd.f32 %v897, %v898
          %v900 = vsel %vm892, %v880, 0.0
          %v901 = vadd.f32 %v899, %v900
          %v902 = vsel %vm892, %v881, 0.0
          %v903 = vadd.f32 %v901, %v902
          %v904 = vsel %vm892, %v882, 0.0
          %v905 = vadd.f32 %v903, %v904
          %v906 = vsel %vm892, %v883, 0.0
          %v907 = vadd.f32 %v905, %v906
          %v908 = vsel %vm892, %v884, 0.0
          %v909 = vadd.f32 %v907, %v908
          %v910 = vsel %vm892, %v885, 0.0
          %v911 = vadd.f32 %v909, %v910
          %v912 = vsel %vm892, %v886, 0.0
          %v913 = vadd.f32 %v911, %v912
          %v914 = vsel %vm892, %v887, 0.0
          %v915 = vadd.f32 %v913, %v914
          %v916 = vsel %vm892, %v888, 0.0
          %v917 = vadd.f32 %v915, %v916
          %v918 = vsel %vm892, %v889, 0.0
          %v919 = vadd.f32 %v917, %v918
          %v920 = vsel %vm892, %v890, 0.0
          %v921 = vadd.f32 %v919, %v920
          %v922 = vsel %vm892, %v891, 0.0
          %v923 = vadd.f32 %v921, %v922
          %924 = vadd.xlane.f32.xlu0 %v923
          %v925 = vpop.xlane.xlu0 %924
          %v926 = vrot.slane %v925, 4
          %v927 = vadd.f32 %v925, %v926
          %v928 = vrot.slane %v927, 2
          %v929 = vadd.f32 %v927, %v928
          %v930 = vrot.slane %v929, 1
          %v931 = vadd.f32 %v929, %v930
          %s932 = vtos %v931
          %v933 = vstv %s932
          %934 = vst [vmem:[%s333] sm:$0xff] %v933
        $region82: #{tpu_custom_call.1} parent=65 // pred_fallthru
          _
        %s935 = sand.u32 %s97, 1
        %s936 = scalar_lea.sflag [#allocation7], %s935
        %s937 = sand.u32 %s97, 1
        %s938 = smul.addr %s937, 8
        %s939 = scalar_lea.vmem [#allocation6], %s938
        %s940 = sand.u32 %s123, 1
        %s941 = scalar_lea.sflag [#allocation9], %s940
        %s942 = sand.u32 %s123, 1
        %s943 = smul.addr %s942, 8
        %s944 = scalar_lea.vmem [#allocation8], %s943
        // Predicated region
        $region83: #{tpu_custom_call.1} parent=65 // pred_check
          %p945 = pneg %p107
        $region84: #{tpu_custom_call.1} parent=65 // pred_check_branch
          %947 = sbr.rel (%p945) target = $region86
        $region85: #{tpu_custom_call.1} parent=65 // pred_region
          %s949 = ssub.s32 128, 128
          %950 = vsyncadd %s936, %s949
          %s951 = smul.addr %s25, 128
          %s952 = scalar_lea.hbm %s2, %s951
          %s954 = sshll.u32 %s939, 4
          %s955 = int_to_ptr.vmem [resolvable:$true] %s954
          %957 = dma.vmem_to_hbm [thread:$0]  %s955, 128, %s952, %s936
        $region86: #{tpu_custom_call.1} parent=65 // pred_fallthru
          _
        // Predicated region
        $region87: #{tpu_custom_call.1} parent=65 // pred_check
          %p958 = pneg %p133
        $region88: #{tpu_custom_call.1} parent=65 // pred_check_branch
          %960 = sbr.rel (%p958) target = $region90
        $region89: #{tpu_custom_call.1} parent=65 // pred_region
          %s962 = ssub.s32 128, 128
          %963 = vsyncadd %s941, %s962
          %s964 = smul.addr %s25, 128
          %s965 = scalar_lea.hbm %s3, %s964
          %s967 = sshll.u32 %s944, 4
          %s968 = int_to_ptr.vmem [resolvable:$true] %s967
          %970 = dma.vmem_to_hbm [thread:$0]  %s968, 128, %s965, %s941
        $region90: #{tpu_custom_call.1} parent=65 // pred_fallthru
          _
      $region66: #{tpu_custom_call.1} parent=5 // pred_fallthru
        _
      %p971 = scmp.le.s32.totalorder 2, %s16
      // Predicated region
      $region91: #{tpu_custom_call.1} parent=5 // pred_check
        %p972 = pneg %p971
      $region92: #{tpu_custom_call.1} parent=5 // pred_check_branch
        %974 = sbr.rel (%p972) target = $region94
      $region93: #{tpu_custom_call.1} parent=5 // pred_region
        %s975 = ssub.s32 %s16, 2
        // Predicated region
        $region95: #{tpu_custom_call.1} parent=93 // pred_check
          %p976 = pneg %p113
        $region96: #{tpu_custom_call.1} parent=93 // pred_check_branch
          %978 = sbr.rel (%p976) target = $region98
        $region97: #{tpu_custom_call.1} parent=93 // pred_region
          %s979 = sand.u32 %s98, 1
          %s980 = scalar_lea.sflag [#allocation7], %s979
          %s981 = sand.u32 %s98, 1
          %s982 = smul.addr %s981, 8
          %s983 = scalar_lea.vmem [#allocation6], %s982
          %984 = dma.done %s980, 128
        $region98: #{tpu_custom_call.1} parent=93 // pred_fallthru
          _
        // Predicated region
        $region99: #{tpu_custom_call.1} parent=93 // pred_check
          %p985 = pneg %p139
        $region100: #{tpu_custom_call.1} parent=93 // pred_check_branch
          %987 = sbr.rel (%p985) target = $region102
        $region101: #{tpu_custom_call.1} parent=93 // pred_region
          %s988 = sand.u32 %s124, 1
          %s989 = scalar_lea.sflag [#allocation9], %s988
          %s990 = sand.u32 %s124, 1
          %s991 = smul.addr %s990, 8
          %s992 = scalar_lea.vmem [#allocation8], %s991
          %993 = dma.done %s989, 128
        $region102: #{tpu_custom_call.1} parent=93 // pred_fallthru
          _
      $region94: #{tpu_custom_call.1} parent=5 // pred_fallthru
        _
    $region6: #{tpu_custom_call.1} parent=1 // loop_footer
      %s20 = sadd.s32 1, %s16
    $region7: #{tpu_custom_call.1} parent=1 // loop_footer_branch
      %15 = sbr.rel target = $region3
    $region8: #{tpu_custom_call.1} parent=1 // loop_exit
      _
    %994 = vsyncpa [#allocation7], 1
    %s995 = scalar_lea.sflag [#allocation7], 1
    %996 = vsyncpa %s995, 1
    %997 = vsyncpa [#allocation9], 1
    %s998 = scalar_lea.sflag [#allocation9], 1
    %999 = vsyncpa %s998, 1

</llo_original>
